<compile_context>
chip_gen: v7x
topology: tpu7x:2x2x1
jax: 0.10.0
libtpu: 0.0.40
codegen_flags: <defaults>
</compile_context>

<pallas_src>
import math

import jax
import jax.numpy as jnp
from jax import lax
from jax.experimental import pallas as pl
from jax.experimental.pallas import tpu as pltpu


_NODE_CAP = 32            # max nodes folded per block (bounds block-diag FLOP inflation)
_ROW_CAP = 8192           # max batch rows per block
_MASK_BUDGET = 8 << 20    # max bytes for the resident block-diagonal mask tile


def _lcm(a, b):
    return a * b // math.gcd(a, b)


def _choose_d_blk(d, m_in, m_out, w_itemsize):
    """Nodes folded per grid step. Never forces padding of x / out."""
    need_in = 128 // math.gcd(128, m_in)
    need_out = 128 // math.gcd(128, m_out)
    base = _lcm(need_in, need_out)                      # divides 128
    # keep the (K, N) block-diagonal tile bounded
    size_cap = int(math.isqrt(_MASK_BUDGET // max(1, m_in * m_out * w_itemsize)))
    cap = max(1, min(_NODE_CAP, max(size_cap, 1)))
    if d <= cap:
        return d                      # single group: full-extent lane escape
    if base <= cap:
        return (cap // base) * base   # lane-dense blocks; ragged last group masked in-kernel
    if d <= base:
        return d                      # single group: full-extent lane escape
    # TODO(synk): awkward (m_in, m_out) (e.g. m_out == 1) with d > 128: the fold
    # inflates MXU FLOPs by `base`x; a VPU multiply + segmented-reduce path would
    # keep v5e memory-bound for these shapes.
    return base


def _vmem_limit_bytes():
    try:
        phys = int(pltpu.get_tpu_info().vmem_capacity_bytes)
    except Exception:                 # interpret mode / older runtimes
        phys = 64 << 20               # assume the smallest (v7x-sized) VMEM
    # ~96 MiB on v5e/v6e (128 MiB physical), ~48 MiB on v7x (64 MiB physical)
    return int(min(phys * 3 // 4, 96 << 20))


def _pick_n_blk(n, per_row_bytes, budget_bytes, pack):
    cap = min(_ROW_CAP, max(pack, budget_bytes // max(per_row_bytes, 1)))
    if n <= cap:
        return n                      # whole batch in one block (full-extent escape)
    return max(pack, (cap // pack) * pack)


def _make_kernel(d_blk, block_k, total_k, ragged_d, group_axis, has_bias):
    def kernel(x_ref, w_ref, mask_ref, *rest):
        if has_bias:
            b_ref, o_ref = rest
        else:
            (o_ref,) = rest

        x = x_ref[...]
        if ragged_d:
            # Last node group: zero the stale lanes of the boundary block so
            # uninitialized VMEM (possibly NaN/Inf) cannot leak into valid nodes.
            g = pl.program_id(group_axis)
            valid = total_k - g * block_k
            lane = lax.broadcasted_iota(jnp.int32, (1, block_k), 1)
            x = jnp.where(lane < valid, x, 0)

        # Expand the compact (K, m_out) group weight into the (K, N) block-diagonal
        # tile in registers (never materialized in HBM).
        w_bd = mask_ref[...] * jnp.tile(w_ref[...], (1, d_blk))

        acc = jnp.dot(x, w_bd, preferred_element_type=jnp.float32)
        if has_bias:
            acc = acc + b_ref[...].astype(jnp.float32)
        o_ref[...] = acc.astype(o_ref.dtype)

    return kernel


def locally_connected(x, weight, bias=None, *, block_rows=None):
    """Pallas-TPU forward of LocallyConnected.

    x: [n, d, m_in]; weight: [d, m_in, m_out]; bias: [d, m_out] or None.
    Returns [n, d, m_out] in x.dtype (bf16 in -> bf16 out, f32 accumulation).
    """
    n, d, m_in = x.shape
    dw, m_in_w, m_out = weight.shape
    assert (dw, m_in_w) == (d, m_in), "weight shape does not match x"
    out_dtype = x.dtype
    x_isz = jnp.dtype(x.dtype).itemsize
    w_isz = jnp.dtype(weight.dtype).itemsize

    d_blk = _choose_d_blk(d, m_in, m_out, w_isz)
    num_groups = pl.cdiv(d, d_blk)
    K = d_blk * m_in
    N = d_blk * m_out
    ragged_d = (d % d_blk) != 0

    # --- weight / bias: compact per-group layout (only these tiny arrays get padded) ---
    d_pad = num_groups * d_blk
    if d_pad != d:
        weight = jnp.pad(weight, ((0, d_pad - d), (0, 0), (0, 0)))
        if bias is not None:
            bias = jnp.pad(bias, ((0, d_pad - d), (0, 0)))
    w3 = weight.reshape(num_groups, K, m_out)
    b3 = None if bias is None else bias.reshape(num_groups, 1, N)

    # 0/1 block-diagonal pattern shared by all groups (single resident VMEM tile).
    mask = jnp.kron(jnp.eye(d_blk, dtype=weight.dtype),
                    jnp.ones((m_in, m_out), dtype=weight.dtype))

    # --- x / out: contiguous (free) reshapes, never padded or sliced ---
    x2 = x.reshape(n, d * m_in)

    # --- batch tiling from the real VMEM size ---
    vmem_limit = _vmem_limit_bytes()
    resident = (K * N * w_isz                          # mask (resident)
                + 2 * K * m_out * w_isz                # compact weight (double-buffered)
                + (2 * N * w_isz if bias is not None else 0))
    budget = max(2 << 20, vmem_limit - resident - (6 << 20))   # headroom for Mosaic scratch
    per_row = 2 * (K + N) * x_isz                      # double-buffered x block + out block
    pack = {4: 8, 2: 16, 1: 32}.get(x_isz, 8)          # sublane packing of the I/O dtype
    n_blk = block_rows if block_rows is not None else _pick_n_blk(n, per_row, budget, pack)
    grid_n = pl.cdiv(n, n_blk)

    # --- grid order: put the axis with more blocks first so megacore (v7x) splits it ---
    if grid_n >= num_groups:
        grid = (grid_n, num_groups)
        nid, gid = 0, 1
    else:
        grid = (num_groups, grid_n)
        nid, gid = 1, 0

    def x_map(*idx):
        return (idx[nid], idx[gid])

    def o_map(*idx):
        return (idx[nid], idx[gid])

    def w_map(*idx):
        return (idx[gid], 0, 0)

    def b_map(*idx):
        return (idx[gid], 0, 0)

    def m_map(*idx):
        return (0, 0)

    in_specs = [
        pl.BlockSpec((n_blk, K), x_map),
        pl.BlockSpec((None, K, m_out), w_map),         # leading group dim squeezed away
        pl.BlockSpec((K, N), m_map),                   # constant block index -> resident
    ]
    args = [x2, w3, mask]
    if bias is not None:
        in_specs.append(pl.BlockSpec((None, 1, N), b_map))
        args.append(b3)

    kernel = _make_kernel(d_blk, K, d * m_in, ragged_d, gid, bias is not None)

    bytes_accessed = (n * d * m_in * x_isz + d * m_in * m_out * w_isz
                      + (d * m_out * w_isz if bias is not None else 0)
                      + n * d * m_out * x_isz)

    out2 = pl.pallas_call(
        kernel,
        out_shape=jax.ShapeDtypeStruct((n, d * m_out), out_dtype),
        grid=grid,
        in_specs=in_specs,
        out_specs=pl.BlockSpec((n_blk, N), o_map),
        compiler_params=pltpu.CompilerParams(
            dimension_semantics=("parallel", "parallel"),
            vmem_limit_bytes=vmem_limit,
        ),
        cost_estimate=pl.CostEstimate(
            flops=2 * n * d * m_in * m_out,            # true (non-inflated) work
            transcendentals=0,
            bytes_accessed=bytes_accessed,
        ),
    )(*args)

    return out2.reshape(n, d, m_out)


if __name__ == "__main__":
    key = jax.random.PRNGKey(0)

    def reference(x, w, b):
        out = jnp.einsum("ndi,dio->ndo", x.astype(jnp.float32), w.astype(jnp.float32),
                         precision=lax.Precision.HIGHEST)
        if b is not None:
            out = out + b.astype(jnp.float32)[None]
        return out

    # (n, d, m_in, m_out, bias, dtype, block_rows, tol)
    configs = [
        (2, 4, 16, 8, True, jnp.float32, None, 1e-4),     # spec-sized: single node group
        (64, 48, 16, 8, True, jnp.float32, None, 1e-4),   # lane-dense groups + ragged last group
        (70, 20, 16, 8, False, jnp.float32, 32, 1e-4),    # no bias, ragged cdiv batch blocks
        (24, 40, 16, 1, True, jnp.float32, None, 1e-4),   # NOTEARS m_out=1, full-extent single group
        (16, 130, 16, 1, True, jnp.float32, None, 1e-4),  # m_out=1, d>128: ragged-group lane masking
        (40, 12, 16, 4, True, jnp.bfloat16, None, 2e-2),  # opt-in bf16 I/O (f32 MXU accumulation)
    ]

    for idx, (n, d, m_in, m_out, use_bias, dtype, block_rows, tol) in enumerate(configs):
        key, kx, kw, kb = jax.random.split(key, 4)
        bound = math.sqrt(1.0 / m_in)  # matches reset_parameters() U(-sqrt(1/m_in), sqrt(1/m_in))
        x = jax.random.normal(kx, (n, d, m_in), dtype=jnp.float32).astype(dtype)
        w = jax.random.uniform(kw, (d, m_in, m_out), minval=-bound, maxval=bound,
                               dtype=jnp.float32).astype(dtype)
        b = (jax.random.uniform(kb, (d, m_out), minval=-bound, maxval=bound,
                                dtype=jnp.float32).astype(dtype) if use_bias else None)

        out = jax.block_until_ready(locally_connected(x, w, b, block_rows=block_rows))
        ref = reference(x, w, b)
        assert out.shape == (n, d, m_out), f"shape mismatch in config {idx}"
        assert out.dtype == dtype, f"dtype mismatch in config {idx}"
        assert jnp.allclose(out.astype(jnp.float32), ref, atol=tol, rtol=tol), \
            f"value mismatch in config {idx}"

    print("KERNEL_OK")
</pallas_src>

<mosaic_0001>
module attributes {stable_mosaic.version = 11 : i64} {
  func.func @kernel(%arg0: i32, %arg1: i32, %arg2: memref<2x64xf32, #tpu.memory_space<vmem>>, %arg3: memref<1x64x8xf32, #tpu.memory_space<vmem>>, %arg4: memref<64x32xf32, #tpu.memory_space<vmem>>, %arg5: memref<1x1x32xf32, #tpu.memory_space<vmem>>, %arg6: memref<2x32xf32, #tpu.memory_space<vmem>>) attributes {dimension_semantics = [#tpu.dimension_semantics<parallel>, #tpu.dimension_semantics<parallel>], iteration_bounds = array<i64: 1, 1>, scalar_prefetch = 0 : i64, scratch_operands = 0 : i64, tpu.core_type = #tpu.core_type<tc>, window_params = [{transform_indices = @transform_0, window_bounds = array<i64: 2, 64>}, {transform_indices = @transform_1, window_bounds = array<i64: 1, 64, 8>}, {pipeline_mode = #tpu.pipeline_mode<synchronous>, transform_indices = @transform_2, window_bounds = array<i64: 64, 32>}, {transform_indices = @transform_3, window_bounds = array<i64: 1, 1, 32>}, {transform_indices = @transform_4, window_bounds = array<i64: 2, 32>}]} {
    %c0 = arith.constant 0 : index
    %c0_0 = arith.constant 0 : index
    %0 = vector.load %arg2[%c0, %c0_0] : memref<2x64xf32, #tpu.memory_space<vmem>>, vector<2x64xf32>
    %c0_1 = arith.constant 0 : index
    %c0_2 = arith.constant 0 : index
    %1 = vector.load %arg4[%c0_1, %c0_2] : memref<64x32xf32, #tpu.memory_space<vmem>>, vector<64x32xf32>
    %c0_3 = arith.constant 0 : index
    %c0_4 = arith.constant 0 : index
    %c0_5 = arith.constant 0 : index
    %2 = vector.load %arg3[%c0_3, %c0_4, %c0_5] : memref<1x64x8xf32, #tpu.memory_space<vmem>>, vector<1x64x8xf32>
    %3 = vector.shape_cast %2 : vector<1x64x8xf32> to vector<64x8xf32>
    %4 = tpu.concatenate %3, %3, %3, %3 in 1 : vector<64x8xf32>, vector<64x8xf32>, vector<64x8xf32>, vector<64x8xf32> -> vector<64x32xf32>
    %5 = arith.mulf %1, %4 : vector<64x32xf32>
    %cst = arith.constant dense<0.000000e+00> : vector<2x32xf32>
    %6 = tpu.matmul %0, %5, %cst {dimension_numbers = #tpu.dot_dimension_numbers<[1], [0], [0], [1], [0, 0, 1, 1], [], []>} : vector<2x64xf32>, vector<64x32xf32>, vector<2x32xf32> -> vector<2x32xf32>
    %c0_6 = arith.constant 0 : index
    %c0_7 = arith.constant 0 : index
    %c0_8 = arith.constant 0 : index
    %7 = vector.load %arg5[%c0_6, %c0_7, %c0_8] : memref<1x1x32xf32, #tpu.memory_space<vmem>>, vector<1x1x32xf32>
    %8 = vector.shape_cast %7 : vector<1x1x32xf32> to vector<1x32xf32>
    %9 = vector.broadcast %8 : vector<1x32xf32> to vector<2x32xf32>
    %10 = arith.addf %6, %9 : vector<2x32xf32>
    %c0_9 = arith.constant 0 : index
    %c0_10 = arith.constant 0 : index
    %11 = vector.load %arg6[%c0_9, %c0_10] : memref<2x32xf32, #tpu.memory_space<vmem>>, vector<2x32xf32>
    tpu.vector_store %arg6[%c0_9, %c0_10], %10 {strides = array<i32>} : memref<2x32xf32, #tpu.memory_space<vmem>>, vector<2x32xf32>,
    return
  }
  func.func @transform_0(%arg0: i32, %arg1: i32) -> (i32, i32) {
    %c0_i32 = arith.constant 0 : i32
    return %arg0, %arg1 : i32, i32
  }
  func.func @transform_1(%arg0: i32, %arg1: i32) -> (i32, i32, i32) {
    %c0_i32 = arith.constant 0 : i32
    %c0_i32_0 = arith.constant 0 : i32
    %c0_i32_1 = arith.constant 0 : i32
    return %arg1, %c0_i32, %c0_i32_0 : i32, i32, i32
  }
  func.func @transform_2(%arg0: i32, %arg1: i32) -> (i32, i32) {
    %c0_i32 = arith.constant 0 : i32
    %c0_i32_0 = arith.constant 0 : i32
    %c0_i32_1 = arith.constant 0 : i32
    return %c0_i32, %c0_i32_0 : i32, i32
  }
  func.func @transform_3(%arg0: i32, %arg1: i32) -> (i32, i32, i32) {
    %c0_i32 = arith.constant 0 : i32
    %c0_i32_0 = arith.constant 0 : i32
    %c0_i32_1 = arith.constant 0 : i32
    return %arg1, %c0_i32, %c0_i32_0 : i32, i32, i32
  }
  func.func @transform_4(%arg0: i32, %arg1: i32) -> (i32, i32) {
    %c0_i32 = arith.constant 0 : i32
    return %arg0, %arg1 : i32, i32
  }
}

</mosaic_0001>

<llo_original>
// kernel: tpu_custom_call.1
$region0: #{tpu_custom_call.1}
  #allocation0 [shape = 'u32[]', space=smem, size = 0x4, offset = 0x4, fixed_abs, tag = 'smem constant byte address 0x4 - core index']
  #allocation1 [shape = 'u32[144,128]{1,0:T(1,128)}', space=vmem, size = 0x12000, scoped, tag = 'internal scratch']
  %s0 = inlined_call_operand.vmem [shape: f32[2,64], index: 0, kind: input, shape index: {}]
  %s1 = inlined_call_operand.vmem [shape: f32[1,64,8], index: 1, kind: input, shape index: {}]
  %s2 = inlined_call_operand.vmem [shape: f32[64,32], index: 2, kind: input, shape index: {}]
  %s3 = inlined_call_operand.vmem [shape: f32[1,1,32], index: 3, kind: input, shape index: {}]
  %s4 = inlined_call_operand.hbm [shape: f32[2,32], index: 4, kind: output, shape index: {}]
  %s5 = sld [smem:[#allocation0]]
  $region26: #{tpu_custom_call.1} parent=0
    _
  %s7 = ssub.s32 1, %s5
  %s8 = scalar_select 0, %s7, %s5
  $region1: #{tpu_custom_call.1} parent=0
    #allocation2 [shape = 'u8[1024]{0}', space=vmem, size = 0x400, scoped, tag = 'output window, operand 0, single buffered']
    #allocation3 [shape = 's32[1]{0}', space=sflag, size = 0x4, scoped, tag = 'scoped memory for tpu_custom_call.1']
    %9 = vsyncpa [#allocation3], 0
    // Predicated region
    $region2: #{tpu_custom_call.1} parent=1 // pred_check
      _
    $region3: #{tpu_custom_call.1} parent=1 // pred_check_branch
      %11 = sbr.rel (0) target = $region5
    $region4: #{tpu_custom_call.1} parent=1 // pred_region
      _
    $region5: #{tpu_custom_call.1} parent=1 // pred_fallthru
      _
    // Predicated region
    $region6: #{tpu_custom_call.1} parent=1 // pred_check
      _
    $region7: #{tpu_custom_call.1} parent=1 // pred_check_branch
      %13 = sbr.rel (0) target = $region9
    $region8: #{tpu_custom_call.1} parent=1 // pred_region
      _
    $region9: #{tpu_custom_call.1} parent=1 // pred_fallthru
      _
    // Predicated region
    $region10: #{tpu_custom_call.1} parent=1 // pred_check
      _
    $region11: #{tpu_custom_call.1} parent=1 // pred_check_branch
      %15 = sbr.rel (0) target = $region13
    $region12: #{tpu_custom_call.1} parent=1 // pred_region
      _
    $region13: #{tpu_custom_call.1} parent=1 // pred_fallthru
      _
    // Predicated region
    $region14: #{tpu_custom_call.1} parent=1 // pred_check
      _
    $region15: #{tpu_custom_call.1} parent=1 // pred_check_branch
      %17 = sbr.rel (0) target = $region17
    $region16: #{tpu_custom_call.1} parent=1 // pred_region
      _
    $region17: #{tpu_custom_call.1} parent=1 // pred_fallthru
      _
    %v18 = vld [vmem:[%s0] sm:$0x3]
    %v19 = vld [vmem:[%s2] sm:$0xff]
    %v20 = vld [vmem:[%s2 + $0x8] sm:$0xff]
    %v21 = vld [vmem:[%s2 + $0x10] sm:$0xff]
    %v22 = vld [vmem:[%s2 + $0x18] sm:$0xff]
    %v23 = vld [vmem:[%s2 + $0x20] sm:$0xff]
    %v24 = vld [vmem:[%s2 + $0x28] sm:$0xff]
    %v25 = vld [vmem:[%s2 + $0x30] sm:$0xff]
    %v26 = vld [vmem:[%s2 + $0x38] sm:$0xff]
    %v27 = vld [vmem:[%s1] sm:$0xff]
    %v28 = vld [vmem:[%s1 + $0x8] sm:$0xff]
    %v29 = vld [vmem:[%s1 + $0x10] sm:$0xff]
    %v30 = vld [vmem:[%s1 + $0x18] sm:$0xff]
    %v31 = vld [vmem:[%s1 + $0x20] sm:$0xff]
    %v32 = vld [vmem:[%s1 + $0x28] sm:$0xff]
    %v33 = vld [vmem:[%s1 + $0x30] sm:$0xff]
    %v34 = vld [vmem:[%s1 + $0x38] sm:$0xff]
    %43 = vrot.lane.b32.xlu0 %v27, 8
    %v44 = vpop.permute.xlu0 %43
    %45 = vrot.lane.b32.xlu0 %v28, 8
    %v46 = vpop.permute.xlu0 %45
    %47 = vrot.lane.b32.xlu0 %v29, 8
    %v48 = vpop.permute.xlu0 %47
    %49 = vrot.lane.b32.xlu0 %v30, 8
    %v50 = vpop.permute.xlu0 %49
    %51 = vrot.lane.b32.xlu0 %v31, 8
    %v52 = vpop.permute.xlu0 %51
    %53 = vrot.lane.b32.xlu0 %v32, 8
    %v54 = vpop.permute.xlu0 %53
    %55 = vrot.lane.b32.xlu0 %v33, 8
    %v56 = vpop.permute.xlu0 %55
    %57 = vrot.lane.b32.xlu0 %v34, 8
    %v58 = vpop.permute.xlu0 %57
    %67 = vrot.lane.b32.xlu0 %v27, 16
    %v68 = vpop.permute.xlu0 %67
    %69 = vrot.lane.b32.xlu0 %v28, 16
    %v70 = vpop.permute.xlu0 %69
    %71 = vrot.lane.b32.xlu0 %v29, 16
    %v72 = vpop.permute.xlu0 %71
    %73 = vrot.lane.b32.xlu0 %v30, 16
    %v74 = vpop.permute.xlu0 %73
    %75 = vrot.lane.b32.xlu0 %v31, 16
    %v76 = vpop.permute.xlu0 %75
    %77 = vrot.lane.b32.xlu0 %v32, 16
    %v78 = vpop.permute.xlu0 %77
    %79 = vrot.lane.b32.xlu0 %v33, 16
    %v80 = vpop.permute.xlu0 %79
    %81 = vrot.lane.b32.xlu0 %v34, 16
    %v82 = vpop.permute.xlu0 %81
    %91 = vrot.lane.b32.xlu0 %v27, 24
    %v92 = vpop.permute.xlu0 %91
    %93 = vrot.lane.b32.xlu0 %v28, 24
    %v94 = vpop.permute.xlu0 %93
    %95 = vrot.lane.b32.xlu0 %v29, 24
    %v96 = vpop.permute.xlu0 %95
    %97 = vrot.lane.b32.xlu0 %v30, 24
    %v98 = vpop.permute.xlu0 %97
    %99 = vrot.lane.b32.xlu0 %v31, 24
    %v100 = vpop.permute.xlu0 %99
    %101 = vrot.lane.b32.xlu0 %v32, 24
    %v102 = vpop.permute.xlu0 %101
    %103 = vrot.lane.b32.xlu0 %v33, 24
    %v104 = vpop.permute.xlu0 %103
    %105 = vrot.lane.b32.xlu0 %v34, 24
    %v106 = vpop.permute.xlu0 %105
    %vm115 = vcmask 64512
    %v116 = vsel %vm115, %v27, %v44
    %v117 = vsel %vm115, %v28, %v46
    %v118 = vsel %vm115, %v29, %v48
    %v119 = vsel %vm115, %v30, %v50
    %v120 = vsel %vm115, %v31, %v52
    %v121 = vsel %vm115, %v32, %v54
    %v122 = vsel %vm115, %v33, %v56
    %v123 = vsel %vm115, %v34, %v58
    %vm124 = vcmask 130048
    %v125 = vsel %vm124, %v116, %v68
    %v126 = vsel %vm124, %v117, %v70
    %v127 = vsel %vm124, %v118, %v72
    %v128 = vsel %vm124, %v119, %v74
    %v129 = vsel %vm124, %v120, %v76
    %v130 = vsel %vm124, %v121, %v78
    %v131 = vsel %vm124, %v122, %v80
    %v132 = vsel %vm124, %v123, %v82
    %vm133 = vcmask 195584
    %v134 = vsel %vm133, %v125, %v92
    %v135 = vsel %vm133, %v126, %v94
    %v136 = vsel %vm133, %v127, %v96
    %v137 = vsel %vm133, %v128, %v98
    %v138 = vsel %vm133, %v129, %v100
    %v139 = vsel %vm133, %v130, %v102
    %v140 = vsel %vm133, %v131, %v104
    %v141 = vsel %vm133, %v132, %v106
    %v142 = vmul.f32 %v19, %v134
    %v143 = vmul.f32 %v20, %v135
    %v144 = vmul.f32 %v21, %v136
    %v145 = vmul.f32 %v22, %v137
    %v146 = vmul.f32 %v23, %v138
    %v147 = vmul.f32 %v24, %v139
    %v148 = vmul.f32 %v25, %v140
    %v149 = vmul.f32 %v26, %v141
    %v150 = vld [vmem:[%s3] sm:$0x1]
    %v152 = vlaneseq
    %v153 = vshrl.u32 %v152, 7
    %v154 = vsub.s32 0, %v153
    %v155 = vrot.slane %v150, %v154
    %vm157 = vcmask 523264
    %v159 = vsel %vm157, %v18, 0
    %161 = vmatprep.subr.mxu0 0.0
    %162 = vmatpush1.msra.mxu0 %v142
    %163 = vmatprep.subr.mxu0 0.0
    %164 = vmatpush1.msra.mxu0 %v143
    %165 = vmatprep.subr.mxu0 0.0
    %166 = vmatpush1.msra.mxu0 %v144
    %167 = vmatprep.subr.mxu0 0.0
    %168 = vmatpush1.msra.mxu0 %v145
    %169 = vmatprep.subr.mxu0 0.0
    %170 = vmatpush1.msra.mxu0 %v146
    %171 = vmatprep.subr.mxu0 0.0
    %172 = vmatpush1.msra.mxu0 %v147
    %173 = vmatprep.subr.mxu0 0.0
    %174 = vmatpush1.msra.mxu0 %v148
    %175 = vmatprep.subr.mxu0 0.0
    %176 = vmatpush1.msra.mxu0 %v149
    %177 = vmatprep.subr.mxu0 0.0
    %178 = vmatpush1.msra.mxu0 0.0
    %179 = vmatprep.subr.mxu0 0.0
    %180 = vmatpush1.msra.mxu0 0.0
    %181 = vmatprep.subr.mxu0 0.0
    %182 = vmatpush1.msra.mxu0 0.0
    %183 = vmatprep.subr.mxu0 0.0
    %184 = vmatpush1.msra.mxu0 0.0
    %185 = vmatprep.subr.mxu0 0.0
    %186 = vmatpush1.msra.mxu0 0.0
    %187 = vmatprep.subr.mxu0 0.0
    %188 = vmatpush1.msra.mxu0 0.0
    %189 = vmatprep.subr.mxu0 0.0
    %190 = vmatpush1.msra.mxu0 0.0
    %191 = vmatprep.subr.mxu0 0.0
    %192 = vmatpush1.msra.mxu0 0.0
    %193 = vmatprep.subr.mxu0 0.0
    %194 = vmatpush1.msra.mxu0 0.0
    %195 = vmatprep.subr.mxu0 0.0
    %196 = vmatpush1.msra.mxu0 0.0
    %197 = vmatprep.subr.mxu0 0.0
    %198 = vmatpush1.msra.mxu0 0.0
    %199 = vmatprep.subr.mxu0 0.0
    %200 = vmatpush1.msra.mxu0 0.0
    %201 = vmatprep.subr.mxu0 0.0
    %202 = vmatpush1.msra.mxu0 0.0
    %203 = vmatprep.subr.mxu0 0.0
    %204 = vmatpush1.msra.mxu0 0.0
    %205 = vmatprep.subr.mxu0 0.0
    %206 = vmatpush1.msra.mxu0 0.0
    %207 = vmatprep.subr.mxu0 0.0
    %208 = vmatpush1.msra.mxu0 0.0
    %209 = vmatprep.subr.mxu0 0.0
    %210 = vmatpush1.msra.mxu0 0.0
    %211 = vmatprep.subr.mxu0 0.0
    %212 = vmatpush1.msra.mxu0 0.0
    %213 = vmatprep.subr.mxu0 0.0
    %214 = vmatpush1.msra.mxu0 0.0
    %215 = vmatprep.subr.mxu0 0.0
    %216 = vmatpush1.msra.mxu0 0.0
    %217 = vmatprep.subr.mxu0 0.0
    %218 = vmatpush1.msra.mxu0 0.0
    %219 = vmatprep.subr.mxu0 0.0
    %220 = vmatpush1.msra.mxu0 0.0
    %221 = vmatprep.subr.mxu0 0.0
    %222 = vmatpush1.msra.mxu0 0.0
    %223 = vmatprep.subr.mxu0 0.0
    %224 = vmatpush1.msra.mxu0 0.0
    %225 = vmatprep.mubr.f32.mxu0 0.0
    %226 = vmatmul.mubr.f32.gmra.mrb[0].mxu0 %v159
    %v227 = vpop.f32.mrb[0].mxu0
    %v228 = vadd.f32 %v155, %v227
    %v229 = vpop.f32.mrb[0].mxu0
    %230 = vdwg.mxu0
    %vm231 = vcmask 254976
    %232 = vst.msk [vmem:[#allocation2] sm:$0x3] %vm231, %v228
    // Predicated region
    $region18: #{tpu_custom_call.1} parent=1 // pred_check
      _
    $region19: #{tpu_custom_call.1} parent=1 // pred_check_branch
      %234 = sbr.rel (0) target = $region21
    $region20: #{tpu_custom_call.1} parent=1 // pred_region
      %s236 = ssub.s32 32, 32
      %237 = vsyncadd [#allocation3], %s236
      %s239 = sshll.u32 [#allocation2], 4
      %s240 = int_to_ptr.vmem [resolvable:$true] %s239
      %242 = dma.vmem_to_hbm [thread:$0]  %s240, 32, %s4, [#allocation3]
    $region21: #{tpu_custom_call.1} parent=1 // pred_fallthru
      _
    // Predicated region
    $region22: #{tpu_custom_call.1} parent=1 // pred_check
      _
    $region23: #{tpu_custom_call.1} parent=1 // pred_check_branch
      %244 = sbr.rel (0) target = $region25
    $region24: #{tpu_custom_call.1} parent=1 // pred_region
      %245 = dma.done [#allocation3], 32
    $region25: #{tpu_custom_call.1} parent=1 // pred_fallthru
      _
    %246 = vsyncpa [#allocation3], 1

</llo_original>
